<compile_context>
chip_gen: v5e
topology: v5e:2x2
jax: 0.10.0
libtpu: 0.0.40
codegen_flags: <defaults>
</compile_context>

<pallas_src>
import functools

import jax
import jax.numpy as jnp
import numpy as np
from jax import lax
from jax.experimental import pallas as pl
from jax.experimental.pallas import tpu as pltpu

MXU_DTYPE = jnp.bfloat16            # bf16 MXU operands, f32 accumulation
VMEM_LIMIT = 64 * 1024 * 1024       # explicit scoped-VMEM budget (fits v7x)


def _pick_tile(dim, target, multiple):
    """Largest tile <= target that divides `dim` and is a multiple of `multiple`.
    Falls back to the full extent (always a legal Pallas block)."""
    if dim <= target:
        return dim
    t = target - (target % multiple)
    while t >= multiple:
        if dim % t == 0:
            return t
        t -= multiple
    return dim


# ----------------------------------------------------------------------------
# Tiled linear:  out = x @ w + b,   w already (Din, Dout) bf16, b (1, Dout) f32
# grid = (N/tm, Dout/tn, Din/tk), k innermost, f32 VMEM accumulator.
# ----------------------------------------------------------------------------
def _linear_kernel(x_ref, w_ref, b_ref, o_ref, acc_ref):
    kk = pl.program_id(2)

    @pl.when(kk == 0)
    def _():
        acc_ref[...] = jnp.zeros_like(acc_ref)

    acc_ref[...] += jnp.dot(x_ref[...], w_ref[...],
                            preferred_element_type=jnp.float32)

    @pl.when(kk == pl.num_programs(2) - 1)
    def _():
        o_ref[...] = (acc_ref[...] + b_ref[...]).astype(o_ref.dtype)


def linear(x2d, w, b, *, out_dtype, tm=512, tn=512, tk=512):
    """x2d: (N, Din), w: (Din, Dout) bf16, b: (1, Dout) f32 -> (N, Dout)."""
    if x2d.dtype != MXU_DTYPE:
        x2d = x2d.astype(MXU_DTYPE)
    n, din = x2d.shape
    dout = w.shape[1]
    tm = _pick_tile(n, tm, 8)
    tn = _pick_tile(dout, tn, 128)
    tk = _pick_tile(din, tk, 128)
    return pl.pallas_call(
        _linear_kernel,
        grid=(n // tm, dout // tn, din // tk),
        in_specs=[
            pl.BlockSpec((tm, tk), lambda i, j, kk: (i, kk)),
            pl.BlockSpec((tk, tn), lambda i, j, kk: (kk, j)),
            pl.BlockSpec((1, tn), lambda i, j, kk: (0, j)),
        ],
        out_specs=pl.BlockSpec((tm, tn), lambda i, j, kk: (i, j)),
        out_shape=jax.ShapeDtypeStruct((n, dout), out_dtype),
        scratch_shapes=[pltpu.VMEM((tm, tn), jnp.float32)],
        compiler_params=pltpu.CompilerParams(
            dimension_semantics=("parallel", "parallel", "arbitrary"),
            vmem_limit_bytes=VMEM_LIMIT,
        ),
    )(x2d, w, b)


# ----------------------------------------------------------------------------
# Attention path A: returns the full attention-weights tensor (module default).
# Grid (B, H, Sq/tq); Q/K/V head windows are read from the projection slab via
# feature-offset index_maps; output written head-interleaved into (B, Sq, D).
# ----------------------------------------------------------------------------
def _attn_weights_kernel(q_ref, k_ref, v_ref, o_ref, w_ref):
    # q: (1, tq, depth) bf16 (already scaled by 1/sqrt(depth) at init)
    # k/v: (1, Sk, depth) bf16
    s = lax.dot_general(q_ref[0], k_ref[0], (((1,), (1,)), ((), ())),
                        preferred_element_type=jnp.float32)        # (tq, Sk)
    m = jnp.max(s, axis=-1, keepdims=True)
    e = jnp.exp(s - m)
    l = jnp.sum(e, axis=-1, keepdims=True)
    attn = e * pl.reciprocal(l, approx=True)                        # EUP divide
    w_ref[0, 0] = attn
    o_ref[0] = lax.dot_general(attn.astype(v_ref.dtype), v_ref[0],
                               (((1,), (0,)), ((), ())),
                               preferred_element_type=jnp.float32
                               ).astype(o_ref.dtype)


def attention_with_weights(q_slab, k_slab, v_slab, *, num_head, depth,
                           q_off=0, k_off=0, v_off=0, tq=128):
    b, sq = q_slab.shape[0], q_slab.shape[1]
    sk = k_slab.shape[1]
    d_model = num_head * depth
    tq = _pick_tile(sq, tq, 8)
    return pl.pallas_call(
        _attn_weights_kernel,
        grid=(b, num_head, sq // tq),
        in_specs=[
            pl.BlockSpec((1, tq, depth), lambda bi, h, qi: (bi, qi, q_off + h)),
            pl.BlockSpec((1, sk, depth), lambda bi, h, qi: (bi, 0, k_off + h)),
            pl.BlockSpec((1, sk, depth), lambda bi, h, qi: (bi, 0, v_off + h)),
        ],
        out_specs=(
            pl.BlockSpec((1, tq, depth), lambda bi, h, qi: (bi, qi, h)),
            pl.BlockSpec((1, 1, tq, sk), lambda bi, h, qi: (bi, h, qi, 0)),
        ),
        out_shape=(
            jax.ShapeDtypeStruct((b, sq, d_model), MXU_DTYPE),
            jax.ShapeDtypeStruct((b, num_head, sq, sk), jnp.float32),
        ),
        compiler_params=pltpu.CompilerParams(
            dimension_semantics=("parallel", "parallel", "parallel"),
            vmem_limit_bytes=VMEM_LIMIT,
        ),
    )(q_slab, k_slab, v_slab)


# ----------------------------------------------------------------------------
# Attention path B: flash-style online softmax (no O(S^2) weights output).
# Grid (B, H, Sq/tq, Sk/tk) with the reduction (Sk) axis last / "arbitrary".
# ----------------------------------------------------------------------------
def _flash_attn_kernel(q_ref, k_ref, v_ref, o_ref, m_ref, l_ref, acc_ref):
    ki = pl.program_id(3)

    @pl.when(ki == 0)
    def _():
        m_ref[...] = jnp.full_like(m_ref, -jnp.inf)
        l_ref[...] = jnp.zeros_like(l_ref)
        acc_ref[...] = jnp.zeros_like(acc_ref)

    # Q already bf16 and pre-scaled -> no per-K-step mul/cast work.
    s = lax.dot_general(q_ref[0], k_ref[0], (((1,), (1,)), ((), ())),
                        preferred_element_type=jnp.float32)        # (tq, tk)
    m_prev = m_ref[...]
    m_new = jnp.maximum(m_prev, jnp.max(s, axis=-1, keepdims=True))
    alpha = jnp.exp(m_prev - m_new)
    p = jnp.exp(s - m_new)
    l_ref[...] = alpha * l_ref[...] + jnp.sum(p, axis=-1, keepdims=True)
    acc_ref[...] = alpha * acc_ref[...] + lax.dot_general(
        p.astype(v_ref.dtype), v_ref[0], (((1,), (0,)), ((), ())),
        preferred_element_type=jnp.float32)
    m_ref[...] = m_new

    @pl.when(ki == pl.num_programs(3) - 1)
    def _():
        o_ref[0] = (acc_ref[...] * pl.reciprocal(l_ref[...], approx=True)
                    ).astype(o_ref.dtype)


def flash_attention(q_slab, k_slab, v_slab, *, num_head, depth,
                    q_off=0, k_off=0, v_off=0, tq=512, tk=1024):
    b, sq = q_slab.shape[0], q_slab.shape[1]
    sk = k_slab.shape[1]
    d_model = num_head * depth
    tq = _pick_tile(sq, tq, 8)
    tk = _pick_tile(sk, tk, 128)     # keep (tq, tk) score blocks lane-dense
    return pl.pallas_call(
        _flash_attn_kernel,
        grid=(b, num_head, sq // tq, sk // tk),
        in_specs=[
            pl.BlockSpec((1, tq, depth), lambda bi, h, qi, ki: (bi, qi, q_off + h)),
            pl.BlockSpec((1, tk, depth), lambda bi, h, qi, ki: (bi, ki, k_off + h)),
            pl.BlockSpec((1, tk, depth), lambda bi, h, qi, ki: (bi, ki, v_off + h)),
        ],
        out_specs=pl.BlockSpec((1, tq, depth), lambda bi, h, qi, ki: (bi, qi, h)),
        out_shape=jax.ShapeDtypeStruct((b, sq, d_model), MXU_DTYPE),
        scratch_shapes=[
            pltpu.VMEM((tq, 1), jnp.float32),
            pltpu.VMEM((tq, 1), jnp.float32),
            pltpu.VMEM((tq, depth), jnp.float32),
        ],
        compiler_params=pltpu.CompilerParams(
            dimension_semantics=("parallel", "parallel", "parallel", "arbitrary"),
            vmem_limit_bytes=VMEM_LIMIT,
        ),
    )(q_slab, k_slab, v_slab)


# ----------------------------------------------------------------------------
# MultiHeadAttention (glue in plain JAX, hot paths in Pallas)
# ----------------------------------------------------------------------------
class MultiHeadAttention:
    def __init__(self, d_model, num_head, key):
        assert d_model % num_head == 0, "d_model must be divisible by num_heads"
        self.d_model = d_model
        self.num_head = num_head
        self.depth = d_model // num_head
        ks = jax.random.split(key, 8)
        bound = 1.0 / float(d_model) ** 0.5

        def init_w(kk):
            return jax.random.uniform(kk, (d_model, d_model), jnp.float32, -bound, bound)

        def init_b(kk):
            return jax.random.uniform(kk, (d_model,), jnp.float32, -bound, bound)

        # Raw parameters in PyTorch nn.Linear layout (Dout, Din), f32 (for the
        # pure-JAX reference / state-dict compatibility).
        self.wq_w, self.wq_b = init_w(ks[0]), init_b(ks[1])
        self.wk_w, self.wk_b = init_w(ks[2]), init_b(ks[3])
        self.wv_w, self.wv_b = init_w(ks[4]), init_b(ks[5])
        self.dense_w, self.dense_b = init_w(ks[6]), init_b(ks[7])

        # Kernel-side parameters: transposed to (Din, Dout), cast to bf16 once,
        # and the 1/sqrt(depth) attention scale folded into the Q projection.
        scale = 1.0 / float(self.depth) ** 0.5
        self._wq = (self.wq_w.T * scale).astype(MXU_DTYPE)
        self._bq = (self.wq_b * scale).reshape(1, -1)
        self._wk = self.wk_w.T.astype(MXU_DTYPE)
        self._bk = self.wk_b.reshape(1, -1)
        self._wv = self.wv_w.T.astype(MXU_DTYPE)
        self._bv = self.wv_b.reshape(1, -1)
        self._wd = self.dense_w.T.astype(MXU_DTYPE)
        self._bd = self.dense_b.reshape(1, -1)
        # Fused QKV projection for the self-attention path (one matmul call).
        self._w_qkv = jnp.concatenate([self._wq, self._wk, self._wv], axis=1)
        self._b_qkv = jnp.concatenate([self._bq, self._bk, self._bv], axis=1)

    def __call__(self, q, k, v, mask=None, return_weights=True):
        # TODO(synk): additive / causal mask support is not wired into the kernels.
        assert mask is None
        batch, seq_q, d = q.shape
        h = self.num_head

        if q is k and k is v:
            # Self-attention fast path: fused QKV projection; attention kernels
            # index Q/K/V head windows directly out of the (B, S, 3D) slab, so
            # there are no XLA slice copies of the projection output.
            seq_k = seq_q
            qkv = linear(q.reshape(-1, d), self._w_qkv, self._b_qkv,
                         out_dtype=MXU_DTYPE).reshape(batch, seq_q, 3 * d)
            q_slab = k_slab = v_slab = qkv
            q_off, k_off, v_off = 0, h, 2 * h
        else:
            seq_k = k.shape[1]
            q_slab = linear(q.reshape(-1, d), self._wq, self._bq,
                            out_dtype=MXU_DTYPE).reshape(batch, seq_q, d)
            k_slab = linear(k.reshape(-1, d), self._wk, self._bk,
                            out_dtype=MXU_DTYPE).reshape(batch, seq_k, d)
            v_slab = linear(v.reshape(-1, d), self._wv, self._bv,
                            out_dtype=MXU_DTYPE).reshape(batch, seq_k, d)
            q_off = k_off = v_off = 0

        # Note: head feature windows are lane-aligned when depth % 128 == 0
        # (canonical head sizes); smaller depths still compute correctly but
        # pay unaligned-window DMA cost.
        if return_weights:
            ctx, attn_w = attention_with_weights(
                q_slab, k_slab, v_slab, num_head=h, depth=self.depth,
                q_off=q_off, k_off=k_off, v_off=v_off)
        else:
            ctx = flash_attention(
                q_slab, k_slab, v_slab, num_head=h, depth=self.depth,
                q_off=q_off, k_off=k_off, v_off=v_off)
            attn_w = None

        # ctx is already the head-concatenated (B, Sq, D) slab (no transpose).
        op = linear(ctx.reshape(-1, d), self._wd, self._bd,
                    out_dtype=jnp.float32).reshape(batch, seq_q, d)
        return op, attn_w


# ----------------------------------------------------------------------------
# Pure-JAX reference for correctness checking
# ----------------------------------------------------------------------------
def reference_mha(mha, q, k, v):
    def lin(x, w, b):
        return x @ w.T + b

    batch, sq, d = q.shape
    sk = k.shape[1]
    h, dep = mha.num_head, mha.depth
    qp = lin(q, mha.wq_w, mha.wq_b).reshape(batch, sq, h, dep).transpose(0, 2, 1, 3)
    kp = lin(k, mha.wk_w, mha.wk_b).reshape(batch, sk, h, dep).transpose(0, 2, 1, 3)
    vp = lin(v, mha.wv_w, mha.wv_b).reshape(batch, sk, h, dep).transpose(0, 2, 1, 3)
    scores = jnp.einsum("bhqd,bhkd->bhqk", qp, kp) / (dep ** 0.5)
    w = jax.nn.softmax(scores, axis=-1)
    out = jnp.einsum("bhqk,bhkd->bhqd", w, vp)
    out = out.transpose(0, 2, 1, 3).reshape(batch, sq, d)
    return lin(out, mha.dense_w, mha.dense_b), w


if __name__ == "__main__":
    key = jax.random.PRNGKey(0)
    k_param, k_q, k_k, k_v = jax.random.split(key, 4)

    # Small demo shapes; depth = 128 so head feature windows are lane-aligned.
    batch, seq, d_model, num_head = 2, 16, 256, 2
    mha = MultiHeadAttention(d_model, num_head, k_param)

    q = jax.random.normal(k_q, (batch, seq, d_model), jnp.float32)
    k = jax.random.normal(k_k, (batch, seq, d_model), jnp.float32)
    v = jax.random.normal(k_v, (batch, seq, d_model), jnp.float32)

    # Default path: separate Q/K/V inputs + full attention-weights output.
    out, attn_w = mha(q, k, v)
    jax.block_until_ready(out)
    jax.block_until_ready(attn_w)
    assert out.shape == (batch, seq, d_model)
    assert attn_w.shape == (batch, num_head, seq, seq)

    ref_out, ref_w = reference_mha(mha, q, k, v)
    np.testing.assert_allclose(np.asarray(out), np.asarray(ref_out), rtol=5e-2, atol=5e-2)
    np.testing.assert_allclose(np.asarray(attn_w), np.asarray(ref_w), rtol=5e-2, atol=5e-2)

    # Fast path: self-attention (fused QKV) + flash attention (no S^2 weights).
    out_sa, none_w = mha(q, q, q, return_weights=False)
    jax.block_until_ready(out_sa)
    assert none_w is None
    ref_sa, _ = reference_mha(mha, q, q, q)
    np.testing.assert_allclose(np.asarray(out_sa), np.asarray(ref_sa), rtol=5e-2, atol=5e-2)

    print("KERNEL_OK")
</pallas_src>

<mosaic_0001>
module attributes {stable_mosaic.version = 11 : i64} {
  func.func @_linear_kernel(%arg0: i32, %arg1: i32, %arg2: i32, %arg3: memref<32x256xbf16, #tpu.memory_space<vmem>>, %arg4: memref<256x256xbf16, #tpu.memory_space<vmem>>, %arg5: memref<1x256xf32, #tpu.memory_space<vmem>>, %arg6: memref<32x256xbf16, #tpu.memory_space<vmem>>, %arg7: memref<32x256xf32, #tpu.memory_space<vmem>>) attributes {dimension_semantics = [#tpu.dimension_semantics<parallel>, #tpu.dimension_semantics<parallel>, #tpu.dimension_semantics<arbitrary>], iteration_bounds = array<i64: 1, 1, 1>, scalar_prefetch = 0 : i64, scratch_operands = 1 : i64, tpu.core_type = #tpu.core_type<tc>, window_params = [{transform_indices = @transform_0, window_bounds = array<i64: 32, 256>}, {transform_indices = @transform_1, window_bounds = array<i64: 256, 256>}, {transform_indices = @transform_2, window_bounds = array<i64: 1, 256>}, {transform_indices = @transform_3, window_bounds = array<i64: 32, 256>}]} {
    %c0_i32 = arith.constant 0 : i32
    %0 = arith.cmpi eq, %arg2, %c0_i32 : i32
    %1 = arith.extui %0 : i1 to i32
    %c0_i32_0 = arith.constant 0 : i32
    %2 = arith.cmpi ne, %1, %c0_i32_0 : i32
    scf.if %2 {
      %cst_10 = arith.constant 0.000000e+00 : f32
      %12 = vector.broadcast %cst_10 : f32 to vector<32x256xf32>
      %c0_11 = arith.constant 0 : index
      %c0_12 = arith.constant 0 : index
      %13 = vector.load %arg7[%c0_11, %c0_12] : memref<32x256xf32, #tpu.memory_space<vmem>>, vector<32x256xf32>
      tpu.vector_store %arg7[%c0_11, %c0_12], %12 {strides = array<i32>} : memref<32x256xf32, #tpu.memory_space<vmem>>, vector<32x256xf32>,
    } else {
    }
    %c0 = arith.constant 0 : index
    %c0_1 = arith.constant 0 : index
    %3 = vector.load %arg7[%c0, %c0_1] : memref<32x256xf32, #tpu.memory_space<vmem>>, vector<32x256xf32>
    %c0_2 = arith.constant 0 : index
    %c0_3 = arith.constant 0 : index
    %4 = vector.load %arg3[%c0_2, %c0_3] : memref<32x256xbf16, #tpu.memory_space<vmem>>, vector<32x256xbf16>
    %c0_4 = arith.constant 0 : index
    %c0_5 = arith.constant 0 : index
    %5 = vector.load %arg4[%c0_4, %c0_5] : memref<256x256xbf16, #tpu.memory_space<vmem>>, vector<256x256xbf16>
    %cst = arith.constant dense<0.000000e+00> : vector<32x256xf32>
    %6 = tpu.matmul %4, %5, %cst {dimension_numbers = #tpu.dot_dimension_numbers<[1], [0], [0], [1], [0, 0, 1, 1], [], []>} : vector<32x256xbf16>, vector<256x256xbf16>, vector<32x256xf32> -> vector<32x256xf32>
    %7 = arith.addf %3, %6 : vector<32x256xf32>
    %c0_6 = arith.constant 0 : index
    %c0_7 = arith.constant 0 : index
    %8 = vector.load %arg7[%c0_6, %c0_7] : memref<32x256xf32, #tpu.memory_space<vmem>>, vector<32x256xf32>
    tpu.vector_store %arg7[%c0_6, %c0_7], %7 {strides = array<i32>} : memref<32x256xf32, #tpu.memory_space<vmem>>, vector<32x256xf32>,
    %c0_i32_8 = arith.constant 0 : i32
    %9 = arith.cmpi eq, %arg2, %c0_i32_8 : i32
    %10 = arith.extui %9 : i1 to i32
    %c0_i32_9 = arith.constant 0 : i32
    %11 = arith.cmpi ne, %10, %c0_i32_9 : i32
    scf.if %11 {
      %c0_10 = arith.constant 0 : index
      %c0_11 = arith.constant 0 : index
      %12 = vector.load %arg7[%c0_10, %c0_11] : memref<32x256xf32, #tpu.memory_space<vmem>>, vector<32x256xf32>
      %c0_12 = arith.constant 0 : index
      %c0_13 = arith.constant 0 : index
      %13 = vector.load %arg5[%c0_12, %c0_13] : memref<1x256xf32, #tpu.memory_space<vmem>>, vector<1x256xf32>
      %14 = vector.broadcast %13 : vector<1x256xf32> to vector<32x256xf32>
      %15 = arith.addf %12, %14 : vector<32x256xf32>
      %16 = arith.truncf %15 : vector<32x256xf32> to vector<32x256xbf16>
      %c0_14 = arith.constant 0 : index
      %c0_15 = arith.constant 0 : index
      %17 = vector.load %arg6[%c0_14, %c0_15] : memref<32x256xbf16, #tpu.memory_space<vmem>>, vector<32x256xbf16>
      tpu.vector_store %arg6[%c0_14, %c0_15], %16 {strides = array<i32>} : memref<32x256xbf16, #tpu.memory_space<vmem>>, vector<32x256xbf16>,
    } else {
    }
    return
  }
  func.func @transform_0(%arg0: i32, %arg1: i32, %arg2: i32) -> (i32, i32) {
    %c0_i32 = arith.constant 0 : i32
    return %arg0, %arg2 : i32, i32
  }
  func.func @transform_1(%arg0: i32, %arg1: i32, %arg2: i32) -> (i32, i32) {
    %c0_i32 = arith.constant 0 : i32
    return %arg2, %arg1 : i32, i32
  }
  func.func @transform_2(%arg0: i32, %arg1: i32, %arg2: i32) -> (i32, i32) {
    %c0_i32 = arith.constant 0 : i32
    %c0_i32_0 = arith.constant 0 : i32
    return %c0_i32, %arg1 : i32, i32
  }
  func.func @transform_3(%arg0: i32, %arg1: i32, %arg2: i32) -> (i32, i32) {
    %c0_i32 = arith.constant 0 : i32
    return %arg0, %arg1 : i32, i32
  }
}

</mosaic_0001>

<llo_original>
// kernel: tpu_custom_call.1
$region0: #{tpu_custom_call.1}
  #allocation0 [shape = 'u32[]', space=smem, size = 0x4, offset = 0x4, fixed_abs, tag = 'smem constant byte address 0x4 - core index']
  #allocation1 [shape = 'u32[72,128]{1,0:T(1,128)}', space=vmem, size = 0x9000, scoped, tag = 'internal scratch']
  #allocation2 [shape = 'f32[32,256]{1,0:T(8,128)}', space=vmem, size = 0x8000, scoped, tag = 'scratch operand']
  %s0 = inlined_call_operand.hbm [shape: bf16[32,256], index: 0, kind: input, shape index: {}]
  %s1 = inlined_call_operand.hbm [shape: bf16[256,256], index: 1, kind: input, shape index: {}]
  %s2 = inlined_call_operand.hbm [shape: f32[1,256], index: 2, kind: input, shape index: {}]
  %s3 = inlined_call_operand.hbm [shape: bf16[32,256], index: 3, kind: output, shape index: {}]
  %s4 = sld [smem:[#allocation0]]
  $region42: #{tpu_custom_call.1} parent=0
    _
  %s6 = ssub.s32 1, %s4
  %s7 = scalar_select 0, %s6, %s4
  $region1: #{tpu_custom_call.1} parent=0
    #allocation3 [shape = 'u8[16384]{0}', space=vmem, size = 0x4000, scoped, tag = 'input window, operand 0, single buffered']
    #allocation4 [shape = 's32[1]{0}', space=sflag, size = 0x4, scoped, tag = 'scoped memory for tpu_custom_call.1']
    #allocation5 [shape = 's32[1]{0}', space=sflag, size = 0x4, scoped, tag = 'scoped memory for tpu_custom_call.1']
    #allocation6 [shape = 'u8[131072]{0}', space=vmem, size = 0x20000, scoped, tag = 'input window, operand 1, single buffered']
    #allocation7 [shape = 's32[1]{0}', space=sflag, size = 0x4, scoped, tag = 'scoped memory for tpu_custom_call.1']
    #allocation8 [shape = 'u8[1024]{0}', space=vmem, size = 0x400, scoped, tag = 'input window, operand 2, single buffered']
    #allocation9 [shape = 'u8[16384]{0}', space=vmem, size = 0x4000, scoped, tag = 'output window, operand 0, single buffered']
    %8 = vsyncpa [#allocation4], 0
    %9 = vsyncpa [#allocation7], 0
    %10 = vsyncpa [#allocation5], 0
    // Predicated region
    $region2: #{tpu_custom_call.1} parent=1 // pred_check
      _
    $region3: #{tpu_custom_call.1} parent=1 // pred_check_branch
      %12 = sbr.rel (0) target = $region5
    $region4: #{tpu_custom_call.1} parent=1 // pred_region
      %14 = vsyncadd [#allocation4], 0
      %s15 = sshll.u32 %s0, 4
      %s16 = int_to_ptr.hbm [resolvable:$true] %s15
      %s17 = sshll.u32 [#allocation3], 4
      %s18 = int_to_ptr.vmem [resolvable:$true] %s17
      %23 = dma.hbm_to_vmem [thread:$0]  %s16, 512, %s18, [#allocation4], 128, 128, 8
    $region5: #{tpu_custom_call.1} parent=1 // pred_fallthru
      _
    // Predicated region
    $region6: #{tpu_custom_call.1} parent=1 // pred_check
      _
    $region7: #{tpu_custom_call.1} parent=1 // pred_check_branch
      %25 = sbr.rel (0) target = $region9
    $region8: #{tpu_custom_call.1} parent=1 // pred_region
      %27 = vsyncadd [#allocation7], 0
      %s28 = sshll.u32 %s1, 4
      %s29 = int_to_ptr.hbm [resolvable:$true] %s28
      %s30 = sshll.u32 [#allocation6], 4
      %s31 = int_to_ptr.vmem [resolvable:$true] %s30
      %36 = dma.hbm_to_vmem [thread:$0]  %s29, 4096, %s31, [#allocation7], 128, 128, 8
    $region9: #{tpu_custom_call.1} parent=1 // pred_fallthru
      _
    // Predicated region
    $region10: #{tpu_custom_call.1} parent=1 // pred_check
      _
    $region11: #{tpu_custom_call.1} parent=1 // pred_check_branch
      %38 = sbr.rel (0) target = $region13
    $region12: #{tpu_custom_call.1} parent=1 // pred_region
      %40 = vsyncadd [#allocation7], 0
      %s42 = sshll.u32 %s2, 4
      %s43 = int_to_ptr.hbm [resolvable:$true] %s42
      %s44 = sshll.u32 [#allocation8], 4
      %s45 = int_to_ptr.vmem [resolvable:$true] %s44
      %47 = dma.hbm_to_vmem [thread:$0]  %s43, 32, %s45, [#allocation7]
    $region13: #{tpu_custom_call.1} parent=1 // pred_fallthru
      _
    // Predicated region
    $region14: #{tpu_custom_call.1} parent=1 // pred_check
      _
    $region15: #{tpu_custom_call.1} parent=1 // pred_check_branch
      %49 = sbr.rel (0) target = $region17
    $region16: #{tpu_custom_call.1} parent=1 // pred_region
      %51 = dma.done [#allocation4], 512
    $region17: #{tpu_custom_call.1} parent=1 // pred_fallthru
      _
    // Predicated region
    $region18: #{tpu_custom_call.1} parent=1 // pred_check
      _
    $region19: #{tpu_custom_call.1} parent=1 // pred_check_branch
      %53 = sbr.rel (0) target = $region21
    $region20: #{tpu_custom_call.1} parent=1 // pred_region
      %55 = dma.done [#allocation7], 4096
    $region21: #{tpu_custom_call.1} parent=1 // pred_fallthru
      _
    // Predicated region
    $region22: #{tpu_custom_call.1} parent=1 // pred_check
      _
    $region23: #{tpu_custom_call.1} parent=1 // pred_check_branch
      %57 = sbr.rel (0) target = $region25
    $region24: #{tpu_custom_call.1} parent=1 // pred_region
      %59 = dma.done [#allocation7], 32
    $region25: #{tpu_custom_call.1} parent=1 // pred_fallthru
      _
    %p60 = scmp.eq.s32.totalorder 0, 0
    // Predicated region
    $region26: #{tpu_custom_call.1} parent=1 // pred_check
      %p61 = pneg %p60
    $region27: #{tpu_custom_call.1} parent=1 // pred_check_branch
      %63 = sbr.rel (%p61) target = $region29
    $region28: #{tpu_custom_call.1} parent=1 // pred_region
      %64 = vst [vmem:[#allocation2] sm:$0xff] 0.0
      %65 = vst [vmem:[#allocation2 + $0x8] sm:$0xff] 0.0
      %66 = vst [vmem:[#allocation2 + $0x10] sm:$0xff] 0.0
      %67 = vst [vmem:[#allocation2 + $0x18] sm:$0xff] 0.0
      %68 = vst [vmem:[#allocation2 + $0x20] sm:$0xff] 0.0
      %69 = vst [vmem:[#allocation2 + $0x28] sm:$0xff] 0.0
      %70 = vst [vmem:[#allocation2 + $0x30] sm:$0xff] 0.0
      %71 = vst [vmem:[#allocation2 + $0x38] sm:$0xff] 0.0
    $region29: #{tpu_custom_call.1} parent=1 // pred_fallthru
      _
    %v72 = vld [vmem:[#allocation2] sm:$0xff]
    %v73 = vld [vmem:[#allocation2 + $0x8] sm:$0xff]
    %v74 = vld [vmem:[#allocation2 + $0x10] sm:$0xff]
    %v75 = vld [vmem:[#allocation2 + $0x18] sm:$0xff]
    %v76 = vld [vmem:[#allocation2 + $0x20] sm:$0xff]
    %v77 = vld [vmem:[#allocation2 + $0x28] sm:$0xff]
    %v78 = vld [vmem:[#allocation2 + $0x30] sm:$0xff]
    %v79 = vld [vmem:[#allocation2 + $0x38] sm:$0xff]
    %v80 = vld [vmem:[#allocation3] sm:$0xff]
    %v81 = vld [vmem:[#allocation3 + $0x8] sm:$0xff]
    %v82 = vld [vmem:[#allocation3 + $0x10] sm:$0xff]
    %v83 = vld [vmem:[#allocation3 + $0x18] sm:$0xff]
    %v84 = vld [vmem:[#allocation6] sm:$0xff]
    %v85 = vld [vmem:[#allocation6 + $0x8] sm:$0xff]
    %v86 = vld [vmem:[#allocation6 + $0x10] sm:$0xff]
    %v87 = vld [vmem:[#allocation6 + $0x18] sm:$0xff]
    %v88 = vld [vmem:[#allocation6 + $0x20] sm:$0xff]
    %v89 = vld [vmem:[#allocation6 + $0x28] sm:$0xff]
    %v90 = vld [vmem:[#allocation6 + $0x30] sm:$0xff]
    %v91 = vld [vmem:[#allocation6 + $0x38] sm:$0xff]
    %v92 = vld [vmem:[#allocation6 + $0x40] sm:$0xff]
    %v93 = vld [vmem:[#allocation6 + $0x48] sm:$0xff]
    %v94 = vld [vmem:[#allocation6 + $0x50] sm:$0xff]
    %v95 = vld [vmem:[#allocation6 + $0x58] sm:$0xff]
    %v96 = vld [vmem:[#allocation6 + $0x60] sm:$0xff]
    %v97 = vld [vmem:[#allocation6 + $0x68] sm:$0xff]
    %v98 = vld [vmem:[#allocation6 + $0x70] sm:$0xff]
    %v99 = vld [vmem:[#allocation6 + $0x78] sm:$0xff]
    %v100 = vld [vmem:[#allocation6 + $0x80] sm:$0xff]
    %v101 = vld [vmem:[#allocation6 + $0x88] sm:$0xff]
    %v102 = vld [vmem:[#allocation6 + $0x90] sm:$0xff]
    %v103 = vld [vmem:[#allocation6 + $0x98] sm:$0xff]
    %v104 = vld [vmem:[#allocation6 + $0xa0] sm:$0xff]
    %v105 = vld [vmem:[#allocation6 + $0xa8] sm:$0xff]
    %v106 = vld [vmem:[#allocation6 + $0xb0] sm:$0xff]
    %v107 = vld [vmem:[#allocation6 + $0xb8] sm:$0xff]
    %v108 = vld [vmem:[#allocation6 + $0xc0] sm:$0xff]
    %v109 = vld [vmem:[#allocation6 + $0xc8] sm:$0xff]
    %v110 = vld [vmem:[#allocation6 + $0xd0] sm:$0xff]
    %v111 = vld [vmem:[#allocation6 + $0xd8] sm:$0xff]
    %v112 = vld [vmem:[#allocation6 + $0xe0] sm:$0xff]
    %v113 = vld [vmem:[#allocation6 + $0xe8] sm:$0xff]
    %v114 = vld [vmem:[#allocation6 + $0xf0] sm:$0xff]
    %v115 = vld [vmem:[#allocation6 + $0xf8] sm:$0xff]
    %v120 = vunpack.c.l.b16 %v80
    %v121 = vunpack.c.h.b16 %v80
    %v122 = vunpack.c.l.b16 %v81
    %v123 = vunpack.c.h.b16 %v81
    %v124 = vunpack.c.l.b16 %v82
    %v125 = vunpack.c.h.b16 %v82
    %v126 = vunpack.c.l.b16 %v83
    %v127 = vunpack.c.h.b16 %v83
    %v128 = vpack.c.b16 %v122, %v120
    %v129 = vpack.c.b16 %v123, %v121
    %v130 = vpack.c.b16 %v126, %v124
    %v131 = vpack.c.b16 %v127, %v125
    %v168 = vunpack.c.l.b16 %v84
    %v169 = vunpack.c.h.b16 %v84
    %v170 = vunpack.c.l.b16 %v85
    %v171 = vunpack.c.h.b16 %v85
    %v172 = vunpack.c.l.b16 %v86
    %v173 = vunpack.c.h.b16 %v86
    %v174 = vunpack.c.l.b16 %v87
    %v175 = vunpack.c.h.b16 %v87
    %v176 = vunpack.c.l.b16 %v88
    %v177 = vunpack.c.h.b16 %v88
    %v178 = vunpack.c.l.b16 %v89
    %v179 = vunpack.c.h.b16 %v89
    %v180 = vunpack.c.l.b16 %v90
    %v181 = vunpack.c.h.b16 %v90
    %v182 = vunpack.c.l.b16 %v91
    %v183 = vunpack.c.h.b16 %v91
    %v184 = vunpack.c.l.b16 %v92
    %v185 = vunpack.c.h.b16 %v92
    %v186 = vunpack.c.l.b16 %v93
    %v187 = vunpack.c.h.b16 %v93
    %v188 = vunpack.c.l.b16 %v94
    %v189 = vunpack.c.h.b16 %v94
    %v190 = vunpack.c.l.b16 %v95
    %v191 = vunpack.c.h.b16 %v95
    %v192 = vunpack.c.l.b16 %v96
    %v193 = vunpack.c.h.b16 %v96
    %v194 = vunpack.c.l.b16 %v97
    %v195 = vunpack.c.h.b16 %v97
    %v196 = vunpack.c.l.b16 %v98
    %v197 = vunpack.c.h.b16 %v98
    %v198 = vunpack.c.l.b16 %v99
    %v199 = vunpack.c.h.b16 %v99
    %v200 = vunpack.c.l.b16 %v100
    %v201 = vunpack.c.h.b16 %v100
    %v202 = vunpack.c.l.b16 %v101
    %v203 = vunpack.c.h.b16 %v101
    %v204 = vunpack.c.l.b16 %v102
    %v205 = vunpack.c.h.b16 %v102
    %v206 = vunpack.c.l.b16 %v103
    %v207 = vunpack.c.h.b16 %v103
    %v208 = vunpack.c.l.b16 %v104
    %v209 = vunpack.c.h.b16 %v104
    %v210 = vunpack.c.l.b16 %v105
    %v211 = vunpack.c.h.b16 %v105
    %v212 = vunpack.c.l.b16 %v106
    %v213 = vunpack.c.h.b16 %v106
    %v214 = vunpack.c.l.b16 %v107
    %v215 = vunpack.c.h.b16 %v107
    %v216 = vunpack.c.l.b16 %v108
    %v217 = vunpack.c.h.b16 %v108
    %v218 = vunpack.c.l.b16 %v109
    %v219 = vunpack.c.h.b16 %v109
    %v220 = vunpack.c.l.b16 %v110
    %v221 = vunpack.c.h.b16 %v110
    %v222 = vunpack.c.l.b16 %v111
    %v223 = vunpack.c.h.b16 %v111
    %v224 = vunpack.c.l.b16 %v112
    %v225 = vunpack.c.h.b16 %v112
    %v226 = vunpack.c.l.b16 %v113
    %v227 = vunpack.c.h.b16 %v113
    %v228 = vunpack.c.l.b16 %v114
    %v229 = vunpack.c.h.b16 %v114
    %v230 = vunpack.c.l.b16 %v115
    %v231 = vunpack.c.h.b16 %v115
    %v232 = vpack.c.b16 %v170, %v168
    %v233 = vpack.c.b16 %v171, %v169
    %v234 = vpack.c.b16 %v174, %v172
    %v235 = vpack.c.b16 %v175, %v173
    %v236 = vpack.c.b16 %v178, %v176
    %v237 = vpack.c.b16 %v179, %v177
    %v238 = vpack.c.b16 %v182, %v180
    %v239 = vpack.c.b16 %v183, %v181
    %v240 = vpack.c.b16 %v186, %v184
    %v241 = vpack.c.b16 %v187, %v185
    %v242 = vpack.c.b16 %v190, %v188
    %v243 = vpack.c.b16 %v191, %v189
    %v244 = vpack.c.b16 %v194, %v192
    %v245 = vpack.c.b16 %v195, %v193
    %v246 = vpack.c.b16 %v198, %v196
    %v247 = vpack.c.b16 %v199, %v197
    %v248 = vpack.c.b16 %v202, %v200
    %v249 = vpack.c.b16 %v203, %v201
    %v250 = vpack.c.b16 %v206, %v204
    %v251 = vpack.c.b16 %v207, %v205
    %v252 = vpack.c.b16 %v210, %v208
    %v253 = vpack.c.b16 %v211, %v209
    %v254 = vpack.c.b16 %v214, %v212
    %v255 = vpack.c.b16 %v215, %v213
    %v256 = vpack.c.b16 %v218, %v216
    %v257 = vpack.c.b16 %v219, %v217
    %v258 = vpack.c.b16 %v222, %v220
    %v259 = vpack.c.b16 %v223, %v221
    %v260 = vpack.c.b16 %v226, %v224
    %v261 = vpack.c.b16 %v227, %v225
    %v262 = vpack.c.b16 %v230, %v228
    %v263 = vpack.c.b16 %v231, %v229
    %296 = vmatpush.bf16.msra.mxu0 %v246
    %297 = vmatpush.bf16.msra.mxu0 %v244
    %298 = vmatpush.bf16.msra.mxu0 %v242
    %299 = vmatpush.bf16.msra.mxu0 %v240
    %300 = vmatpush.bf16.msra.mxu0 %v238
    %301 = vmatpush.bf16.msra.mxu0 %v236
    %302 = vmatpush.bf16.msra.mxu0 %v234
    %303 = vmatpush.bf16.msra.mxu0 %v232
    %304 = vmatmul.bf16.gmra.mxu0 %v128
    %v305 = vpop.f32.mrf.mxu0
    %v306 = vadd.f32 0.0, %v305
    %v307 = vpop.f32.mrf.mxu0
    %v308 = vadd.f32 0.0, %v307
    %309 = vmatmul.bf16.gmra.mxu0 %v130
    %v310 = vpop.f32.mrf.mxu0
    %v311 = vadd.f32 0.0, %v310
    %v312 = vpop.f32.mrf.mxu0
    %v313 = vadd.f32 0.0, %v312
    %314 = vdwg.mxu0
    %315 = vmatpush.bf16.msra.mxu0 %v262
    %316 = vmatpush.bf16.msra.mxu0 %v260
    %317 = vmatpush.bf16.msra.mxu0 %v258
    %318 = vmatpush.bf16.msra.mxu0 %v256
    %319 = vmatpush.bf16.msra.mxu0 %v254
    %320 = vmatpush.bf16.msra.mxu0 %v252
    %321 = vmatpush.bf16.msra.mxu0 %v250
    %322 = vmatpush.bf16.msra.mxu0 %v248
    %323 = vmatmul.bf16.gmra.mxu0 %v129
    %v324 = vpop.f32.mrf.mxu0
    %v325 = vadd.f32 %v306, %v324
    %v326 = vpop.f32.mrf.mxu0
    %v327 = vadd.f32 %v308, %v326
    %328 = vmatmul.bf16.gmra.mxu0 %v131
    %v329 = vpop.f32.mrf.mxu0
    %v330 = vadd.f32 %v311, %v329
    %v331 = vpop.f32.mrf.mxu0
    %v332 = vadd.f32 %v313, %v331
    %333 = vdwg.mxu0
    %334 = vmatpush.bf16.msra.mxu0 %v247
    %335 = vmatpush.bf16.msra.mxu0 %v245
    %336 = vmatpush.bf16.msra.mxu0 %v243
    %337 = vmatpush.bf16.msra.mxu0 %v241
    %338 = vmatpush.bf16.msra.mxu0 %v239
    %339 = vmatpush.bf16.msra.mxu0 %v237
    %340 = vmatpush.bf16.msra.mxu0 %v235
    %341 = vmatpush.bf16.msra.mxu0 %v233
    %342 = vmatmul.bf16.gmra.mxu0 %v128
    %v343 = vpop.f32.mrf.mxu0
    %v344 = vadd.f32 0.0, %v343
    %v345 = vpop.f32.mrf.mxu0
    %v346 = vadd.f32 0.0, %v345
    %347 = vmatmul.bf16.gmra.mxu0 %v130
    %v348 = vpop.f32.mrf.mxu0
    %v349 = vadd.f32 0.0, %v348
    %v350 = vpop.f32.mrf.mxu0
    %v351 = vadd.f32 0.0, %v350
    %352 = vdwg.mxu0
    %353 = vmatpush.bf16.msra.mxu0 %v263
    %354 = vmatpush.bf16.msra.mxu0 %v261
    %355 = vmatpush.bf16.msra.mxu0 %v259
    %356 = vmatpush.bf16.msra.mxu0 %v257
    %357 = vmatpush.bf16.msra.mxu0 %v255
    %358 = vmatpush.bf16.msra.mxu0 %v253
    %359 = vmatpush.bf16.msra.mxu0 %v251
    %360 = vmatpush.bf16.msra.mxu0 %v249
    %361 = vmatmul.bf16.gmra.mxu0 %v129
    %v362 = vpop.f32.mrf.mxu0
    %v363 = vadd.f32 %v344, %v362
    %v364 = vpop.f32.mrf.mxu0
    %v365 = vadd.f32 %v346, %v364
    %366 = vmatmul.bf16.gmra.mxu0 %v131
    %v367 = vpop.f32.mrf.mxu0
    %v368 = vadd.f32 %v349, %v367
    %v369 = vpop.f32.mrf.mxu0
    %v370 = vadd.f32 %v351, %v369
    %371 = vdwg.mxu0
    %v372 = vadd.f32 %v72, %v325
    %v373 = vadd.f32 %v73, %v363
    %v374 = vadd.f32 %v74, %v327
    %v375 = vadd.f32 %v75, %v365
    %v376 = vadd.f32 %v76, %v330
    %v377 = vadd.f32 %v77, %v368
    %v378 = vadd.f32 %v78, %v332
    %v379 = vadd.f32 %v79, %v370
    %380 = vst [vmem:[#allocation2] sm:$0xff] %v372
    %381 = vst [vmem:[#allocation2 + $0x8] sm:$0xff] %v373
    %382 = vst [vmem:[#allocation2 + $0x10] sm:$0xff] %v374
    %383 = vst [vmem:[#allocation2 + $0x18] sm:$0xff] %v375
    %384 = vst [vmem:[#allocation2 + $0x20] sm:$0xff] %v376
    %385 = vst [vmem:[#allocation2 + $0x28] sm:$0xff] %v377
    %386 = vst [vmem:[#allocation2 + $0x30] sm:$0xff] %v378
    %387 = vst [vmem:[#allocation2 + $0x38] sm:$0xff] %v379
    // Predicated region
    $region30: #{tpu_custom_call.1} parent=1 // pred_check
      %p388 = pneg %p60
    $region31: #{tpu_custom_call.1} parent=1 // pred_check_branch
      %390 = sbr.rel (%p388) target = $region33
    $region32: #{tpu_custom_call.1} parent=1 // pred_region
      %v391 = vld [vmem:[#allocation2] sm:$0xff]
      %v392 = vld [vmem:[#allocation2 + $0x8] sm:$0xff]
      %v393 = vld [vmem:[#allocation2 + $0x10] sm:$0xff]
      %v394 = vld [vmem:[#allocation2 + $0x18] sm:$0xff]
      %v395 = vld [vmem:[#allocation2 + $0x20] sm:$0xff]
      %v396 = vld [vmem:[#allocation2 + $0x28] sm:$0xff]
      %v397 = vld [vmem:[#allocation2 + $0x30] sm:$0xff]
      %v398 = vld [vmem:[#allocation2 + $0x38] sm:$0xff]
      %v399 = vld [vmem:[#allocation8] sm:$0x3]
      %v401 = vperm.slane %v399, 0
      %v402 = vperm.slane %v399, 1
      %v405 = vadd.f32 %v391, %v401
      %v406 = vadd.f32 %v392, %v402
      %v407 = vadd.f32 %v393, %v401
      %v408 = vadd.f32 %v394, %v402
      %v409 = vadd.f32 %v395, %v401
      %v410 = vadd.f32 %v396, %v402
      %v411 = vadd.f32 %v397, %v401
      %v412 = vadd.f32 %v398, %v402
      %v413 = vpack.c.bf16 %v406, %v405
      %v414 = vpack.c.bf16 %v408, %v407
      %v415 = vpack.c.bf16 %v410, %v409
      %v416 = vpack.c.bf16 %v412, %v411
      %417 = vst [vmem:[#allocation9] sm:$0xff] %v413
      %418 = vst [vmem:[#allocation9 + $0x8] sm:$0xff] %v414
      %419 = vst [vmem:[#allocation9 + $0x10] sm:$0xff] %v415
      %420 = vst [vmem:[#allocation9 + $0x18] sm:$0xff] %v416
    $region33: #{tpu_custom_call.1} parent=1 // pred_fallthru
      _
    // Predicated region
    $region34: #{tpu_custom_call.1} parent=1 // pred_check
      _
    $region35: #{tpu_custom_call.1} parent=1 // pred_check_branch
      %422 = sbr.rel (0) target = $region37
    $region36: #{tpu_custom_call.1} parent=1 // pred_region
      %424 = vsyncadd [#allocation5], 0
      %s425 = sshll.u32 [#allocation9], 4
      %s426 = int_to_ptr.vmem [resolvable:$true] %s425
      %s427 = sshll.u32 %s3, 4
      %s428 = int_to_ptr.hbm [resolvable:$true] %s427
      %433 = dma.vmem_to_hbm [thread:$0]  %s426, 512, %s428, [#allocation5], 128, 128, 8
    $region37: #{tpu_custom_call.1} parent=1 // pred_fallthru
      _
    // Predicated region
    $region38: #{tpu_custom_call.1} parent=1 // pred_check
      _
    $region39: #{tpu_custom_call.1} parent=1 // pred_check_branch
      %435 = sbr.rel (0) target = $region41
    $region40: #{tpu_custom_call.1} parent=1 // pred_region
      %437 = dma.done [#allocation5], 512
    $region41: #{tpu_custom_call.1} parent=1 // pred_fallthru
      _
    %438 = vsyncpa [#allocation4], 1
    %439 = vsyncpa [#allocation7], 1
    %440 = vsyncpa [#allocation5], 1

</llo_original>
